<compile_context>
chip_gen: v5e
topology: v5e:2x2
jax: 0.10.0
libtpu: 0.0.40
codegen_flags: <defaults>
</compile_context>

<pallas_src>
import functools

import jax
import jax.numpy as jnp
from jax.experimental import pallas as pl
from jax.experimental.pallas import tpu as pltpu


def conv_lrelu_kernel(p_ref, w_ref, b_ref, o_ref, *, cout, negative_slope):
    # p_ref: (1, tile_m, K)      bf16 im2col patches (built in the wrapper)
    # w_ref: (K, Cout_pad)       bf16 weights (Cout zero-padded to 128 lanes)
    # b_ref: (1, Cout)           f32 bias
    # o_ref: (1, tile_m, Cout)   f32 output (unpadded writeback)
    acc = jnp.dot(p_ref[0], w_ref[...], preferred_element_type=jnp.float32)
    acc = acc[:, :cout] + b_ref[...]
    o_ref[0] = jnp.where(acc >= 0, acc, negative_slope * acc).astype(o_ref.dtype)


def _vmem_config():
    """(vmem_limit_bytes, per-kernel tile budget) per TPU generation."""
    phys = 64 * 1024 * 1024                      # conservative default (v7x)
    try:
        info = pltpu.get_tpu_info()
        phys = getattr(info, "vmem_capacity_bytes", phys) or phys
    except Exception:                            # keep conservative default
        pass
    if phys >= 128 * 1024 * 1024:                # v5e / v6e: 128 MiB physical
        return 96 * 1024 * 1024, 24 * 1024 * 1024
    return 48 * 1024 * 1024, 10 * 1024 * 1024    # v7x: 64 MiB physical


def _pick_tile_m(m_total, k_dim, cout_pad, batch, budget_bytes):
    """M-tile for the (M,K)x(K,Cout_pad) matmul, sized from the REAL VMEM
    footprint: lane padding of the minor dims + double buffering + f32 acc."""
    k_lanes = pl.cdiv(k_dim, 128) * 128
    c_lanes = pl.cdiv(cout_pad, 128) * 128

    def fits(t):
        in_b = 2 * t * k_lanes * 2       # bf16 patch block, double-buffered
        out_b = 2 * t * c_lanes * 4      # f32 output block (lane-padded), x2
        acc_b = 2 * t * c_lanes * 4      # f32 matmul acc / pointwise temps
        return in_b + out_b + acc_b <= budget_bytes

    # Whole image per grid step (no M padding) when it fits and the batch axis
    # already provides >=2 grid points for a dual-TensorCore (v7x) chip.
    if batch >= 2 and fits(m_total):
        return m_total, 1, m_total

    # Otherwise: largest 16-aligned tile (prefer >=128 for the MXU) that fits
    # the budget and still yields >=2 grid points in total.
    for t in (4096, 2048, 1024, 512, 256, 128, 64, 32, 16):
        if t < m_total and fits(t):
            n_tiles = pl.cdiv(m_total, t)
            return t, n_tiles, n_tiles * t

    # Tiny image (or nothing worth splitting): single whole-image tile.
    return m_total, 1, m_total


@functools.partial(jax.jit, static_argnames=("stride", "padding", "negative_slope"))
def conv_base_block(x_nchw, weight_oihw, bias, *, stride=2, padding=None,
                    negative_slope=0.2):
    """Forward of ConvBaseBlock. x_nchw: [N, Cin, H, W] -> [N, Cout, Ho, Wo]."""
    cout, cin, kh, kw = weight_oihw.shape
    pad = kh // 2 if padding is None else padding
    n, c, h, w = x_nchw.shape
    assert c == cin

    ho = (h + 2 * pad - kh) // stride + 1
    wo = (w + 2 * pad - kw) // stride + 1
    k_dim = kh * kw * cin
    m_total = ho * wo

    # ---- wrapper-side im2col (layout plumbing; the kernel is a pure matmul) ----
    # TODO(synk): keep the surrounding model NHWC end-to-end so the NCHW<->NHWC
    # transposes bracketing this mem-bound kernel disappear entirely.
    x = jnp.transpose(x_nchw, (0, 2, 3, 1)).astype(jnp.bfloat16)   # NHWC, bf16
    x = jnp.pad(x, ((0, 0), (pad, pad), (pad, pad), (0, 0)))
    cols = []
    for i in range(kh):
        for j in range(kw):
            cols.append(x[:, i:i + stride * ho:stride,
                          j:j + stride * wo:stride, :])
    patches = jnp.concatenate(cols, axis=-1).reshape(n, m_total, k_dim)

    # Weights: im2col-flattened with (kh, kw, cin)-major order to match the
    # concat above.  Cout is zero-padded to 128 lanes ONLY for the weights
    # (tiny, loaded once) so the MXU matmul stays lane-aligned; the output
    # writeback itself is unpadded.
    cout_pad = pl.cdiv(cout, 128) * 128
    w_mat = jnp.transpose(weight_oihw, (2, 3, 1, 0)).reshape(k_dim, cout)
    w_mat = jnp.pad(w_mat, ((0, 0), (0, cout_pad - cout))).astype(jnp.bfloat16)
    b_mat = bias.astype(jnp.float32).reshape(1, cout)

    vmem_limit, tile_budget = _vmem_config()
    tile_m, n_tiles, m_pad = _pick_tile_m(m_total, k_dim, cout_pad, n, tile_budget)
    if m_pad != m_total:
        patches = jnp.pad(patches, ((0, 0), (0, m_pad - m_total), (0, 0)))

    kernel = functools.partial(conv_lrelu_kernel, cout=cout,
                               negative_slope=negative_slope)
    cost = pl.CostEstimate(
        flops=2 * n * m_pad * k_dim * cout_pad,
        transcendentals=0,
        bytes_accessed=(n * m_pad * k_dim * 2 + k_dim * cout_pad * 2
                        + cout * 4 + n * m_pad * cout * 4))

    out_flat = pl.pallas_call(
        kernel,
        out_shape=jax.ShapeDtypeStruct((n, m_pad, cout), jnp.float32),
        grid=(n, n_tiles),
        in_specs=[
            pl.BlockSpec((1, tile_m, k_dim), lambda b, r: (b, r, 0)),
            pl.BlockSpec((k_dim, cout_pad), lambda b, r: (0, 0)),
            pl.BlockSpec((1, cout), lambda b, r: (0, 0)),
        ],
        out_specs=pl.BlockSpec((1, tile_m, cout), lambda b, r: (b, r, 0)),
        compiler_params=pltpu.CompilerParams(
            dimension_semantics=("parallel", "parallel"),
            vmem_limit_bytes=vmem_limit),
        cost_estimate=cost,
    )(patches, w_mat, b_mat)

    out = out_flat[:, :m_total].reshape(n, ho, wo, cout)
    return jnp.transpose(out, (0, 3, 1, 2)).astype(x_nchw.dtype)   # back to NCHW


if __name__ == "__main__":
    key = jax.random.PRNGKey(0)
    k_x, k_w, k_b = jax.random.split(key, 3)

    N, CIN, H, W = 2, 4, 16, 16
    COUT, KSIZE, STRIDE = 8, 3, 2
    PAD = KSIZE // 2

    x = jax.random.normal(k_x, (N, CIN, H, W), dtype=jnp.float32)
    weight = 0.1 * jax.random.normal(k_w, (COUT, CIN, KSIZE, KSIZE),
                                     dtype=jnp.float32)
    bias = 0.1 * jax.random.normal(k_b, (COUT,), dtype=jnp.float32)

    out = conv_base_block(x, weight, bias, stride=STRIDE)
    out = jax.block_until_ready(out)

    # Reference: f32 conv + bias + LeakyReLU (nn.Conv2d semantics).  The kernel
    # feeds the MXU in bf16 (per perf review), so the tolerance is relaxed.
    ref = jax.lax.conv_general_dilated(
        x, weight, window_strides=(STRIDE, STRIDE),
        padding=((PAD, PAD), (PAD, PAD)),
        dimension_numbers=("NCHW", "OIHW", "NCHW"),
        precision=jax.lax.Precision.HIGHEST)
    ref = ref + bias.reshape(1, -1, 1, 1)
    ref = jnp.where(ref >= 0, ref, 0.2 * ref)

    assert out.shape == (N, COUT, H // 2, W // 2), out.shape
    max_err = float(jnp.max(jnp.abs(out - ref)))
    assert max_err < 3e-2, max_err

    print("KERNEL_OK")
</pallas_src>

<mosaic_0001>
module attributes {stable_mosaic.version = 11 : i64} {
  func.func @conv_lrelu_kernel(%arg0: i32, %arg1: i32, %arg2: memref<1x64x36xbf16, #tpu.memory_space<vmem>>, %arg3: memref<36x128xbf16, #tpu.memory_space<vmem>>, %arg4: memref<1x8xf32, #tpu.memory_space<vmem>>, %arg5: memref<1x64x8xf32, #tpu.memory_space<vmem>>) attributes {dimension_semantics = [#tpu.dimension_semantics<parallel>, #tpu.dimension_semantics<parallel>], iteration_bounds = array<i64: 2, 1>, scalar_prefetch = 0 : i64, scratch_operands = 0 : i64, tpu.core_type = #tpu.core_type<tc>, window_params = [{transform_indices = @transform_0, window_bounds = array<i64: 1, 64, 36>}, {pipeline_mode = #tpu.pipeline_mode<synchronous>, transform_indices = @transform_1, window_bounds = array<i64: 36, 128>}, {pipeline_mode = #tpu.pipeline_mode<synchronous>, transform_indices = @transform_2, window_bounds = array<i64: 1, 8>}, {transform_indices = @transform_3, window_bounds = array<i64: 1, 64, 8>}]} {
    %c0 = arith.constant 0 : index
    %c0_0 = arith.constant 0 : index
    %c0_1 = arith.constant 0 : index
    %0 = vector.load %arg2[%c0, %c0_0, %c0_1] : memref<1x64x36xbf16, #tpu.memory_space<vmem>>, vector<1x64x36xbf16>
    %1 = vector.shape_cast %0 : vector<1x64x36xbf16> to vector<64x36xbf16>
    %c0_2 = arith.constant 0 : index
    %c0_3 = arith.constant 0 : index
    %2 = vector.load %arg3[%c0_2, %c0_3] : memref<36x128xbf16, #tpu.memory_space<vmem>>, vector<36x128xbf16>
    %cst = arith.constant dense<0.000000e+00> : vector<64x128xf32>
    %3 = tpu.matmul %1, %2, %cst {dimension_numbers = #tpu.dot_dimension_numbers<[1], [0], [0], [1], [0, 0, 1, 1], [], []>} : vector<64x36xbf16>, vector<36x128xbf16>, vector<64x128xf32> -> vector<64x128xf32>
    %4 = vector.extract_strided_slice %3 {offsets = [0, 0], sizes = [64, 8], strides = [1, 1]} : vector<64x128xf32> to vector<64x8xf32>
    %c0_4 = arith.constant 0 : index
    %c0_5 = arith.constant 0 : index
    %5 = vector.load %arg4[%c0_4, %c0_5] : memref<1x8xf32, #tpu.memory_space<vmem>>, vector<1x8xf32>
    %6 = vector.broadcast %5 : vector<1x8xf32> to vector<64x8xf32>
    %7 = arith.addf %4, %6 : vector<64x8xf32>
    %cst_6 = arith.constant 0.000000e+00 : f32
    %8 = vector.broadcast %cst_6 : f32 to vector<64x8xf32>
    %9 = arith.cmpf oge, %7, %8 : vector<64x8xf32>
    %cst_7 = arith.constant 2.000000e-01 : f32
    %10 = vector.broadcast %cst_7 : f32 to vector<64x8xf32>
    %11 = arith.mulf %10, %7 : vector<64x8xf32>
    %12 = arith.select %9, %7, %11 : vector<64x8xi1>, vector<64x8xf32>
    %c0_8 = arith.constant 0 : index
    %c0_9 = arith.constant 0 : index
    %c0_10 = arith.constant 0 : index
    %13 = vector.load %arg5[%c0_8, %c0_9, %c0_10] : memref<1x64x8xf32, #tpu.memory_space<vmem>>, vector<1x64x8xf32>
    %14 = vector.shape_cast %13 : vector<1x64x8xf32> to vector<64x8xf32>
    %15 = vector.shape_cast %12 : vector<64x8xf32> to vector<1x64x8xf32>
    tpu.vector_store %arg5[%c0_8, %c0_9, %c0_10], %15 {strides = array<i32>} : memref<1x64x8xf32, #tpu.memory_space<vmem>>, vector<1x64x8xf32>,
    return
  }
  func.func @transform_0(%arg0: i32, %arg1: i32) -> (i32, i32, i32) {
    %c0_i32 = arith.constant 0 : i32
    %c0_i32_0 = arith.constant 0 : i32
    return %arg0, %arg1, %c0_i32 : i32, i32, i32
  }
  func.func @transform_1(%arg0: i32, %arg1: i32) -> (i32, i32) {
    %c0_i32 = arith.constant 0 : i32
    %c0_i32_0 = arith.constant 0 : i32
    %c0_i32_1 = arith.constant 0 : i32
    return %c0_i32, %c0_i32_0 : i32, i32
  }
  func.func @transform_2(%arg0: i32, %arg1: i32) -> (i32, i32) {
    %c0_i32 = arith.constant 0 : i32
    %c0_i32_0 = arith.constant 0 : i32
    %c0_i32_1 = arith.constant 0 : i32
    return %c0_i32, %c0_i32_0 : i32, i32
  }
  func.func @transform_3(%arg0: i32, %arg1: i32) -> (i32, i32, i32) {
    %c0_i32 = arith.constant 0 : i32
    %c0_i32_0 = arith.constant 0 : i32
    return %arg0, %arg1, %c0_i32 : i32, i32, i32
  }
}

</mosaic_0001>

<llo_original>
// kernel: conv_base_block.1
$region0: #{conv_base_block.1}
  #allocation0 [shape = 'u32[]', space=smem, size = 0x4, offset = 0x4, fixed_abs, tag = 'smem constant byte address 0x4 - core index']
  #allocation1 [shape = 'u32[72,128]{1,0:T(1,128)}', space=vmem, size = 0x9000, scoped, tag = 'internal scratch']
  %s0 = inlined_call_operand.vmem [shape: bf16[2,64,36], index: 0, kind: input, shape index: {}]
  %s1 = inlined_call_operand.vmem [shape: bf16[36,128], index: 1, kind: input, shape index: {}]
  %s2 = inlined_call_operand.vmem [shape: f32[1,8], index: 2, kind: input, shape index: {}]
  %s3 = inlined_call_operand.vmem [shape: f32[2,64,8], index: 3, kind: output, shape index: {}]
  %s4 = sld [smem:[#allocation0]]
  $region45: #{conv_base_block.1} parent=0
    _
  %s6 = ssub.s32 1, %s4
  %s7 = scalar_select 0, %s6, %s4
  loop: start=0, step=1, limit=4
  $region2: #{conv_base_block.1} parent=0 // loop_pre_header
    _
  $region3: #{conv_base_block.1} parent=0 // loop_header
    %s9 = sphi 0, %s13
    %p10 = scmp.ge.s32.totalorder %s9, 4
    %s16 = sphi 0, %s28
    %s17 = sphi 0, %s24
    %s18 = sphi 0, %s16
    %s19 = sphi 0, %s17
    %s20 = sphi 0, %s18
    %s21 = sphi 0, %s19
    %s33 = sphi 0, %s35
    %s36 = sphi 0, %s33
    %s37 = sphi 0, %s36
    %s53 = sphi 0, %s37
    %s57 = sphi 0, %s57
    %s59 = sphi 0, %s57
    %s60 = sphi 0, %s59
    %s74 = sphi 0, %s60
    %s78 = sphi 0, %s78
    %s80 = sphi 0, %s78
    %s81 = sphi 0, %s80
    %s95 = sphi 0, %s81
    %s103 = sphi 0, %s105
    %s106 = sphi 0, %s103
    %s107 = sphi 0, %s106
    %s123 = sphi 0, %s107
  $region4: #{conv_base_block.1} parent=0 // loop_header_branch
    %12 = sbr.rel (%p10) target = $region8
  $region5: #{conv_base_block.1} parent=0 // loop_body
    %s14 = ssub.s32 %s9, 1
    %s15 = ssub.s32 %s9, 2
    %s22 = sadd.s32 1, %s17
    %p23 = scmp.ge.s32.totalorder %s22, 1
    %s24 = scalar_select %p23, 0, %s22
    %s25 = sadd.s32 1, %s16
    %s26 = scalar_select %p23, %s25, %s16
    %p27 = scmp.ge.s32.totalorder %s26, 2
    %s28 = scalar_select %p27, 0, %s26
    %s29 = ssub.s32 %s16, %s28
    %s30 = ssub.s32 %s17, %s24
    %s31 = sor.u32 %s29, %s30
    %p32 = scmp.eq.s32.totalorder %s31, 0
    %s34 = sadd.s32 %s33, 1
    %s35 = scalar_select %p32, %s33, %s34
    %p38 = pneg %p32
    %p39 = scmp.eq.s32.totalorder %s9, 1
    %p40 = por %p38, %p39
    %p41 = scmp.ne.s32.totalorder %s33, %s36
    %p42 = scmp.eq.s32.totalorder %s9, 0
    %p43 = por %p41, %p42
    %p44 = scmp.ne.s32.totalorder %s33, %s36
    %p45 = scmp.eq.s32.totalorder %s14, 1
    %p46 = por %p44, %p45
    %p47 = scmp.ne.s32.totalorder %s36, %s37
    %p48 = scmp.eq.s32.totalorder %s14, 0
    %p49 = por %p47, %p48
    %p50 = scmp.ne.s32.totalorder %s36, %s37
    %p51 = scmp.eq.s32.totalorder %s15, 1
    %p52 = por %p50, %p51
    %p54 = scmp.ne.s32.totalorder %s37, %s53
    %p55 = scmp.eq.s32.totalorder %s15, 0
    %p56 = por %p54, %p55
    %s58 = sadd.s32 %s57, 1
    %p61 = scmp.eq.s32.totalorder %s9, 1
    %p62 = scmp.ne.s32.totalorder %s57, %s59
    %p63 = scmp.eq.s32.totalorder %s9, 0
    %p64 = por %p62, %p63
    %p65 = scmp.ne.s32.totalorder %s57, %s59
    %p66 = scmp.eq.s32.totalorder %s14, 1
    %p67 = por %p65, %p66
    %p68 = scmp.ne.s32.totalorder %s59, %s60
    %p69 = scmp.eq.s32.totalorder %s14, 0
    %p70 = por %p68, %p69
    %p71 = scmp.ne.s32.totalorder %s59, %s60
    %p72 = scmp.eq.s32.totalorder %s15, 1
    %p73 = por %p71, %p72
    %p75 = scmp.ne.s32.totalorder %s60, %s74
    %p76 = scmp.eq.s32.totalorder %s15, 0
    %p77 = por %p75, %p76
    %s79 = sadd.s32 %s78, 1
    %p82 = scmp.eq.s32.totalorder %s9, 1
    %p83 = scmp.ne.s32.totalorder %s78, %s80
    %p84 = scmp.eq.s32.totalorder %s9, 0
    %p85 = por %p83, %p84
    %p86 = scmp.ne.s32.totalorder %s78, %s80
    %p87 = scmp.eq.s32.totalorder %s14, 1
    %p88 = por %p86, %p87
    %p89 = scmp.ne.s32.totalorder %s80, %s81
    %p90 = scmp.eq.s32.totalorder %s14, 0
    %p91 = por %p89, %p90
    %p92 = scmp.ne.s32.totalorder %s80, %s81
    %p93 = scmp.eq.s32.totalorder %s15, 1
    %p94 = por %p92, %p93
    %p96 = scmp.ne.s32.totalorder %s81, %s95
    %p97 = scmp.eq.s32.totalorder %s15, 0
    %p98 = por %p96, %p97
    %s99 = ssub.s32 %s16, %s28
    %s100 = ssub.s32 %s17, %s24
    %s101 = sor.u32 %s99, %s100
    %p102 = scmp.eq.s32.totalorder %s101, 0
    %s104 = sadd.s32 %s103, 1
    %s105 = scalar_select %p102, %s103, %s104
    %p108 = pneg %p102
    %p109 = scmp.eq.s32.totalorder %s9, 1
    %p110 = por %p108, %p109
    %p111 = scmp.ne.s32.totalorder %s103, %s106
    %p112 = scmp.eq.s32.totalorder %s9, 0
    %p113 = por %p111, %p112
    %p114 = scmp.ne.s32.totalorder %s103, %s106
    %p115 = scmp.eq.s32.totalorder %s14, 1
    %p116 = por %p114, %p115
    %p117 = scmp.ne.s32.totalorder %s106, %s107
    %p118 = scmp.eq.s32.totalorder %s14, 0
    %p119 = por %p117, %p118
    %p120 = scmp.ne.s32.totalorder %s106, %s107
    %p121 = scmp.eq.s32.totalorder %s15, 1
    %p122 = por %p120, %p121
    %p124 = scmp.ne.s32.totalorder %s107, %s123
    %p125 = scmp.eq.s32.totalorder %s15, 0
    %p126 = por %p124, %p125
    %p127 = scmp.le.s32.totalorder 1, %s9
    %p128 = scmp.lt.s32.totalorder %s9, 3
    %p129 = pnand %p127, %p128
    %p130 = pneg %p129
    // Predicated region
    $region9: #{conv_base_block.1} parent=5 // pred_check
      _
    $region10: #{conv_base_block.1} parent=5 // pred_check_branch
      %132 = sbr.rel (%p129) target = $region12
    $region11: #{conv_base_block.1} parent=5 // pred_region
      %s133 = ssub.s32 %s9, 1
      // Predicated region
      $region13: #{conv_base_block.1} parent=11 // pred_check
        %p134 = pneg %p70
      $region14: #{conv_base_block.1} parent=11 // pred_check_branch
        %136 = sbr.rel (%p134) target = $region16
      $region15: #{conv_base_block.1} parent=11 // pred_region
        _
      $region16: #{conv_base_block.1} parent=11 // pred_fallthru
        _
      // Predicated region
      $region17: #{conv_base_block.1} parent=11 // pred_check
        %p137 = pneg %p91
      $region18: #{conv_base_block.1} parent=11 // pred_check_branch
        %139 = sbr.rel (%p137) target = $region20
      $region19: #{conv_base_block.1} parent=11 // pred_region
        _
      $region20: #{conv_base_block.1} parent=11 // pred_fallthru
        _
    $region12: #{conv_base_block.1} parent=5 // pred_fallthru
      _
    %p140 = scmp.lt.s32.totalorder %s9, 2
    // Predicated region
    $region21: #{conv_base_block.1} parent=5 // pred_check
      %p141 = pneg %p140
    $region22: #{conv_base_block.1} parent=5 // pred_check_branch
      %143 = sbr.rel (%p141) target = $region24
    $region23: #{conv_base_block.1} parent=5 // pred_region
      // Predicated region
      $region25: #{conv_base_block.1} parent=23 // pred_check
        %p144 = pneg %p43
      $region26: #{conv_base_block.1} parent=23 // pred_check_branch
        %146 = sbr.rel (%p144) target = $region28
      $region27: #{conv_base_block.1} parent=23 // pred_region
        %s147 = smul.u32 8, %s17
        %p148 = scmp.lt.s32.totalorder %s16, 1
        %s149 = scalar_select %p148, %s16, 1
        %p150 = scmp.lt.s32.totalorder %s147, 7
        %s151 = scalar_select %p150, %s147, 7
        %s152 = smul.addr %s149, 8
        %s153 = sadd.s32 %s151, %s152
        %s154 = smul.addr %s153, 4
        %s155 = scalar_lea.vmem %s0, %s154
        %s156 = smul.u32 8, %s17
      $region28: #{conv_base_block.1} parent=23 // pred_fallthru
        _
    $region24: #{conv_base_block.1} parent=5 // pred_fallthru
      _
    %p157 = scmp.le.s32.totalorder 1, %s9
    %p158 = scmp.lt.s32.totalorder %s9, 3
    %p159 = pnand %p157, %p158
    %p160 = pneg %p159
    // Predicated region
    $region29: #{conv_base_block.1} parent=5 // pred_check
      _
    $region30: #{conv_base_block.1} parent=5 // pred_check_branch
      %162 = sbr.rel (%p159) target = $region32
    $region31: #{conv_base_block.1} parent=5 // pred_region
      %s163 = ssub.s32 %s9, 1
      %s164 = smul.u32 8, %s19
      %p165 = scmp.lt.s32.totalorder %s18, 1
      %s166 = scalar_select %p165, %s18, 1
      %p167 = scmp.lt.s32.totalorder %s164, 7
      %s168 = scalar_select %p167, %s164, 7
      %s169 = smul.addr %s166, 8
      %s170 = sadd.s32 %s168, %s169
      %s171 = smul.addr %s170, 4
      %s172 = scalar_lea.vmem %s0, %s171
      %p173 = pneg %p49
      %p174 = pneg %p46
      %p175 = pneg %p70
      %p176 = pneg %p67
      %p177 = pneg %p91
      %p178 = pneg %p88
      %p179 = pneg %p119
      %p180 = pneg %p116
      %s181 = smul.u32 8, %s19
      %p182 = scmp.lt.s32.totalorder %s18, 1
      %s183 = scalar_select %p182, %s18, 1
      %p184 = scmp.lt.s32.totalorder %s181, 7
      %s185 = scalar_select %p184, %s181, 7
      %s186 = smul.addr %s183, 8
      %s187 = sadd.s32 %s185, %s186
      %s188 = smul.addr %s187, 8
      %s189 = scalar_lea.vmem %s3, %s188
      %s190 = smul.u32 8, %s19
      %p191 = scmp.lt.s32.totalorder %s18, 1
      %s192 = scalar_select %p191, %s18, 1
      %p193 = scmp.lt.s32.totalorder %s190, 7
      %s194 = scalar_select %p193, %s190, 7
      %s195 = smul.addr %s192, 8
      %s196 = sadd.s32 %s194, %s195
      %s197 = smul.addr %s196, 4
      %s198 = scalar_lea.vmem %s0, %s197
      %s199 = smul.u32 8, %s19
      %s200 = smul.u32 8, %s19
      %p201 = scmp.lt.s32.totalorder %s18, 1
      %s202 = scalar_select %p201, %s18, 1
      %p203 = scmp.lt.s32.totalorder %s200, 7
      %s204 = scalar_select %p203, %s200, 7
      %s205 = smul.addr %s202, 8
      %s206 = sadd.s32 %s204, %s205
      %s207 = smul.addr %s206, 8
      %s208 = scalar_lea.vmem %s3, %s207
      %s209 = smul.u32 8, %s19
      %v211 = vld [vmem:[%s198] sm:$0xf]
      %v212 = vld [vmem:[%s198 + $0x4] sm:$0xf]
      %v213 = vld [vmem:[%s198 + $0x8] sm:$0xf]
      %v214 = vld [vmem:[%s198 + $0xc] sm:$0xf]
      %v215 = vld [vmem:[%s198 + $0x10] sm:$0xf]
      %v216 = vld [vmem:[%s198 + $0x14] sm:$0xf]
      %v217 = vld [vmem:[%s198 + $0x18] sm:$0xf]
      %v218 = vld [vmem:[%s198 + $0x1c] sm:$0xf]
      %v219 = vld [vmem:[%s1] sm:$0xf]
      %v220 = vld [vmem:[%s1 + $0x4] sm:$0xf]
      %v221 = vld [vmem:[%s1 + $0x8] sm:$0xf]
      %v222 = vld [vmem:[%s1 + $0xc] sm:$0xf]
      %v223 = vld [vmem:[%s1 + $0x10] sm:$0x3]
      %v232 = vunpack.c.l.b16 %v211
      %v233 = vunpack.c.l.b16 %v212
      %v234 = vunpack.c.l.b16 %v213
      %v235 = vunpack.c.l.b16 %v214
      %v236 = vunpack.c.l.b16 %v215
      %v237 = vunpack.c.l.b16 %v216
      %v238 = vunpack.c.l.b16 %v217
      %v239 = vunpack.c.l.b16 %v218
      %v240 = vpack.c.b16 %v233, %v232
      %v241 = vpack.c.b16 %v235, %v234
      %v242 = vpack.c.b16 %v237, %v236
      %v243 = vpack.c.b16 %v239, %v238
      %v249 = vunpack.c.l.b16 %v219
      %v250 = vunpack.c.l.b16 %v220
      %v251 = vunpack.c.l.b16 %v221
      %v252 = vunpack.c.l.b16 %v222
      %v253 = vunpack.c.l.b16 %v223
      %v254 = vpack.c.b16 %v250, %v249
      %v255 = vpack.c.b16 %v252, %v251
      %v256 = vpack.c.b16 %v253, %v253
      %vm259 = vcmask 293888
      %v261 = vsel %vm259, %v240, 0
      %v264 = vsel %vm259, %v241, 0
      %v267 = vsel %vm259, %v242, 0
      %v270 = vsel %vm259, %v243, 0
      %vm272 = vcmask 1041408
      %v274 = vsel %vm272, %v256, 0
      %276 = vmatpush.bf16.msra.mxu0 0
      %277 = vmatpush.bf16.msra.mxu0 0
      %278 = vmatpush.bf16.msra.mxu0 0
      %279 = vmatpush.bf16.msra.mxu0 0
      %280 = vmatpush.bf16.msra.mxu0 0
      %281 = vmatpush.bf16.msra.mxu0 %v274
      %282 = vmatpush.bf16.msra.mxu0 %v255
      %283 = vmatpush.bf16.msra.mxu0 %v254
      %284 = vmatmul.bf16.gmra.mxu0 %v261
      %v285 = vpop.f32.mrf.mxu0
      %v286 = vadd.f32 0.0, %v285
      %v287 = vpop.f32.mrf.mxu0
      %v288 = vadd.f32 0.0, %v287
      %289 = vmatmul.bf16.gmra.mxu0 %v264
      %v290 = vpop.f32.mrf.mxu0
      %v291 = vadd.f32 0.0, %v290
      %v292 = vpop.f32.mrf.mxu0
      %v293 = vadd.f32 0.0, %v292
      %294 = vmatmul.bf16.gmra.mxu0 %v267
      %v295 = vpop.f32.mrf.mxu0
      %v296 = vadd.f32 0.0, %v295
      %v297 = vpop.f32.mrf.mxu0
      %v298 = vadd.f32 0.0, %v297
      %299 = vmatmul.bf16.gmra.mxu0 %v270
      %v300 = vpop.f32.mrf.mxu0
      %v301 = vadd.f32 0.0, %v300
      %v302 = vpop.f32.mrf.mxu0
      %v303 = vadd.f32 0.0, %v302
      %304 = vdwg.mxu0
      %v305 = vld [vmem:[%s2] sm:$0x1]
      %v307 = vperm.slane %v305, 0
      %v309 = vadd.f32 %v286, %v307
      %v310 = vadd.f32 %v288, %v307
      %v311 = vadd.f32 %v291, %v307
      %v312 = vadd.f32 %v293, %v307
      %v313 = vadd.f32 %v296, %v307
      %v314 = vadd.f32 %v298, %v307
      %v315 = vadd.f32 %v301, %v307
      %v316 = vadd.f32 %v303, %v307
      %vm317 = vcmp.ge.f32.partialorder %v309, 0.0
      %vm318 = vcmp.ge.f32.partialorder %v310, 0.0
      %vm319 = vcmp.ge.f32.partialorder %v311, 0.0
      %vm320 = vcmp.ge.f32.partialorder %v312, 0.0
      %vm321 = vcmp.ge.f32.partialorder %v313, 0.0
      %vm322 = vcmp.ge.f32.partialorder %v314, 0.0
      %vm323 = vcmp.ge.f32.partialorder %v315, 0.0
      %vm324 = vcmp.ge.f32.partialorder %v316, 0.0
      %v325 = vmul.f32 %v309, 0.2
      %v326 = vmul.f32 %v310, 0.2
      %v327 = vmul.f32 %v311, 0.2
      %v328 = vmul.f32 %v312, 0.2
      %v329 = vmul.f32 %v313, 0.2
      %v330 = vmul.f32 %v314, 0.2
      %v331 = vmul.f32 %v315, 0.2
      %v332 = vmul.f32 %v316, 0.2
      %v333 = vsel %vm317, %v309, %v325
      %v334 = vsel %vm318, %v310, %v326
      %v335 = vsel %vm319, %v311, %v327
      %v336 = vsel %vm320, %v312, %v328
      %v337 = vsel %vm321, %v313, %v329
      %v338 = vsel %vm322, %v314, %v330
      %v339 = vsel %vm323, %v315, %v331
      %v340 = vsel %vm324, %v316, %v332
      %vm341 = vcmask 64512
      %342 = vst.msk [vmem:[%s208] sm:$0xff] %vm341, %v333
      %343 = vst.msk [vmem:[%s208 + $0x8] sm:$0xff] %vm341, %v334
      %344 = vst.msk [vmem:[%s208 + $0x10] sm:$0xff] %vm341, %v335
      %345 = vst.msk [vmem:[%s208 + $0x18] sm:$0xff] %vm341, %v336
      %346 = vst.msk [vmem:[%s208 + $0x20] sm:$0xff] %vm341, %v337
      %347 = vst.msk [vmem:[%s208 + $0x28] sm:$0xff] %vm341, %v338
      %348 = vst.msk [vmem:[%s208 + $0x30] sm:$0xff] %vm341, %v339
      %349 = vst.msk [vmem:[%s208 + $0x38] sm:$0xff] %vm341, %v340
      %s350 = smul.u32 8, %s19
      %p351 = scmp.lt.s32.totalorder %s18, 1
      %s352 = scalar_select %p351, %s18, 1
      %p353 = scmp.lt.s32.totalorder %s350, 7
      %s354 = scalar_select %p353, %s350, 7
      %s355 = smul.addr %s352, 8
      %s356 = sadd.s32 %s354, %s355
      %s357 = smul.addr %s356, 8
      %s358 = scalar_lea.vmem %s3, %s357
      // Predicated region
      $region33: #{conv_base_block.1} parent=31 // pred_check
        %p359 = pneg %p116
      $region34: #{conv_base_block.1} parent=31 // pred_check_branch
        %361 = sbr.rel (%p359) target = $region36
      $region35: #{conv_base_block.1} parent=31 // pred_region
        %s362 = smul.u32 8, %s19
      $region36: #{conv_base_block.1} parent=31 // pred_fallthru
        _
    $region32: #{conv_base_block.1} parent=5 // pred_fallthru
      _
    %p363 = scmp.le.s32.totalorder 2, %s9
    // Predicated region
    $region37: #{conv_base_block.1} parent=5 // pred_check
      %p364 = pneg %p363
    $region38: #{conv_base_block.1} parent=5 // pred_check_branch
      %366 = sbr.rel (%p364) target = $region40
    $region39: #{conv_base_block.1} parent=5 // pred_region
      %s367 = ssub.s32 %s9, 2
      // Predicated region
      $region41: #{conv_base_block.1} parent=39 // pred_check
        %p368 = pneg %p122
      $region42: #{conv_base_block.1} parent=39 // pred_check_branch
        %370 = sbr.rel (%p368) target = $region44
      $region43: #{conv_base_block.1} parent=39 // pred_region
        %s371 = smul.u32 8, %s21
        %p372 = scmp.lt.s32.totalorder %s20, 1
        %s373 = scalar_select %p372, %s20, 1
        %p374 = scmp.lt.s32.totalorder %s371, 7
        %s375 = scalar_select %p374, %s371, 7
        %s376 = smul.addr %s373, 8
        %s377 = sadd.s32 %s375, %s376
        %s378 = smul.addr %s377, 8
        %s379 = scalar_lea.vmem %s3, %s378
      $region44: #{conv_base_block.1} parent=39 // pred_fallthru
        _
    $region40: #{conv_base_block.1} parent=5 // pred_fallthru
      _
  $region6: #{conv_base_block.1} parent=0 // loop_footer
    %s13 = sadd.s32 1, %s9
  $region7: #{conv_base_block.1} parent=0 // loop_footer_branch
    %8 = sbr.rel target = $region3
  $region8: #{conv_base_block.1} parent=0 // loop_exit
    _

</llo_original>
